<compile_context>
chip_gen: v5e
topology: v5e:2x2
jax: 0.10.0
libtpu: 0.0.40
codegen_flags: <defaults>
</compile_context>

<pallas_src>
import functools

import jax
import jax.numpy as jnp
from jax.experimental import pallas as pl
from jax.experimental.pallas import tpu as pltpu

H1 = 50
H2 = 50


def _round_up(x, m):
    return ((x + m - 1) // m) * m


def _mlp_kernel(s_ref, a_ref, w1s_ref, w1a_ref, w2_ref, w3_ref, b_ref, o_ref,
                *, h1, h2):
    # Packed biases: (1, h1 + h2 + 1), kept in f32.
    b = b_ref[...]
    b1 = b[:, :h1]
    b2 = b[:, h1:h1 + h2]
    b3 = b[:, h1 + h2:]

    # Layer 1: split-K matmul replaces concat([states, actions], -1) @ W1.
    z1 = (jnp.dot(s_ref[...], w1s_ref[...], preferred_element_type=jnp.float32)
          + jnp.dot(a_ref[...], w1a_ref[...], preferred_element_type=jnp.float32)
          + b1)
    a1 = jnp.tanh(z1)                                    # f32 elementwise (v5e-safe)

    # Layer 2.
    z2 = jnp.dot(a1.astype(w2_ref.dtype), w2_ref[...],
                 preferred_element_type=jnp.float32) + b2
    a2 = jnp.tanh(z2)

    # Layer 3 (out_features = 1): VPU multiply + lane reduce instead of a
    # 1-output-lane-wide MXU matmul.
    w3 = w3_ref[...].astype(jnp.float32)                 # (1, h2)
    o_ref[...] = jnp.sum(a2 * w3, axis=-1, keepdims=True) + b3


def discriminator_forward(states, actions, params, *, block_b=None):
    """states: [B, Ds], actions: [B, Da] -> [B]  (matches nn(...).squeeze(-1))."""
    w1s, w1a, w2, w3_row, b_packed = params
    B, Ds = states.shape
    Da = actions.shape[1]
    h1 = w1s.shape[1]
    h2 = w2.shape[1]

    # Batch tile: >=512 rows when the batch is big enough (HBM-roofline sweet
    # spot), otherwise the whole (sublane-aligned) batch in one step.
    if block_b is None:
        block_b = 512 if B >= 512 else _round_up(max(B, 1), 8)
    bp = _round_up(B, block_b)
    if bp != B:
        states = jnp.pad(states, ((0, bp - B), (0, 0)))
        actions = jnp.pad(actions, ((0, bp - B), (0, 0)))

    states = states.astype(jnp.bfloat16)
    actions = actions.astype(jnp.bfloat16)

    const2 = lambda i: (0, 0)
    kernel = functools.partial(_mlp_kernel, h1=h1, h2=h2)

    out = pl.pallas_call(
        kernel,
        out_shape=jax.ShapeDtypeStruct((bp, 1), jnp.float32),
        grid=(bp // block_b,),
        in_specs=[
            pl.BlockSpec((block_b, Ds), lambda i: (i, 0)),
            pl.BlockSpec((block_b, Da), lambda i: (i, 0)),
            pl.BlockSpec((Ds, h1), const2),          # constant index_maps ->
            pl.BlockSpec((Da, h1), const2),          # weights stay VMEM-resident
            pl.BlockSpec((h1, h2), const2),          # across grid steps
            pl.BlockSpec((1, h2), const2),
            pl.BlockSpec((1, h1 + h2 + 1), const2),
        ],
        out_specs=pl.BlockSpec((block_b, 1), lambda i: (i, 0)),
        compiler_params=pltpu.CompilerParams(
            dimension_semantics=("parallel",)),      # megacore batch split on v7x
    )(states, actions, w1s, w1a, w2, w3_row, b_packed)
    return out[:B, 0]  # .squeeze(-1)


def init_params(key, d_states, d_actions, h1=H1, h2=H2):
    """torch.nn.Linear-style init (U(-1/sqrt(fan_in), +1/sqrt(fan_in))), laid out
    for the kernel: W stored (in, out); W1 split by input source; W3 stored as a
    (1, h2) row; the three biases packed into one (1, h1+h2+1) f32 buffer."""
    d_in = d_states + d_actions
    ks = jax.random.split(key, 6)

    def lin(kw, kb, fan_in, fan_out):
        bound = 1.0 / jnp.sqrt(fan_in)
        w = jax.random.uniform(kw, (fan_in, fan_out), jnp.float32, -bound, bound)
        b = jax.random.uniform(kb, (1, fan_out), jnp.float32, -bound, bound)
        return w, b

    w1, b1 = lin(ks[0], ks[1], d_in, h1)
    w2, b2 = lin(ks[2], ks[3], h1, h2)
    w3, b3 = lin(ks[4], ks[5], h2, 1)

    w1s = w1[:d_states].astype(jnp.bfloat16)
    w1a = w1[d_states:].astype(jnp.bfloat16)
    w2b = w2.astype(jnp.bfloat16)
    w3_row = w3.T.astype(jnp.bfloat16)                    # (1, h2)
    b_packed = jnp.concatenate([b1, b2, b3], axis=-1)     # (1, h1+h2+1), f32
    return (w1s, w1a, w2b, w3_row, b_packed)


def ref_forward(states, actions, params):
    """Pure-JAX reference with the same bf16-storage / f32-accumulate recipe."""
    w1s, w1a, w2, w3_row, b = params
    h1 = w1s.shape[1]
    h2 = w2.shape[1]
    b1, b2, b3 = b[:, :h1], b[:, h1:h1 + h2], b[:, h1 + h2:]
    sb = states.astype(jnp.bfloat16)
    ab = actions.astype(jnp.bfloat16)
    z1 = (jnp.dot(sb, w1s, preferred_element_type=jnp.float32)
          + jnp.dot(ab, w1a, preferred_element_type=jnp.float32) + b1)
    a1 = jnp.tanh(z1)
    z2 = jnp.dot(a1.astype(jnp.bfloat16), w2,
                 preferred_element_type=jnp.float32) + b2
    a2 = jnp.tanh(z2)
    return (jnp.sum(a2 * w3_row.astype(jnp.float32), axis=-1, keepdims=True)
            + b3)[:, 0]


if __name__ == "__main__":
    key = jax.random.PRNGKey(0)
    k_s, k_a, k_p, k_s2, k_a2 = jax.random.split(key, 5)

    # small shapes; LazyLinear in-features = Ds + Da = 24
    B, Ds, Da = 8, 16, 8
    states = jax.random.normal(k_s, (B, Ds), jnp.float32)
    actions = jax.random.normal(k_a, (B, Da), jnp.float32)
    params = init_params(k_p, Ds, Da)

    out = discriminator_forward(states, actions, params)
    jax.block_until_ready(out)
    assert out.shape == (B,)

    # tight check vs a pure-JAX reference using the same mixed precision
    ref = ref_forward(states, actions, params)
    assert jnp.allclose(out, ref, atol=1e-3, rtol=1e-3)

    # loose sanity check vs an all-f32 reference (bf16 storage drift expected)
    w1_full = jnp.concatenate([params[0], params[1]], axis=0).astype(jnp.float32)
    w2_f = params[2].astype(jnp.float32)
    w3_f = params[3].astype(jnp.float32)
    b_f = params[4]
    x = jnp.concatenate([states, actions], axis=-1)
    h = jnp.tanh(x @ w1_full + b_f[:, :H1])
    h = jnp.tanh(h @ w2_f + b_f[:, H1:H1 + H2])
    ref32 = (jnp.sum(h * w3_f, axis=-1, keepdims=True) + b_f[:, H1 + H2:])[:, 0]
    assert jnp.allclose(out, ref32, atol=5e-2, rtol=5e-2)

    # exercise the batch-tiled grid + padding path (B not a multiple of the tile)
    B2 = 1000
    states2 = jax.random.normal(k_s2, (B2, Ds), jnp.float32)
    actions2 = jax.random.normal(k_a2, (B2, Da), jnp.float32)
    out2 = discriminator_forward(states2, actions2, params)
    jax.block_until_ready(out2)
    assert out2.shape == (B2,)
    ref2 = ref_forward(states2, actions2, params)
    assert jnp.allclose(out2, ref2, atol=1e-3, rtol=1e-3)

    print("KERNEL_OK")
</pallas_src>

<mosaic_0001>
module attributes {stable_mosaic.version = 11 : i64} {
  func.func @_mlp_kernel(%arg0: i32, %arg1: memref<8x16xbf16, #tpu.memory_space<vmem>>, %arg2: memref<8x8xbf16, #tpu.memory_space<vmem>>, %arg3: memref<16x50xbf16, #tpu.memory_space<vmem>>, %arg4: memref<8x50xbf16, #tpu.memory_space<vmem>>, %arg5: memref<50x50xbf16, #tpu.memory_space<vmem>>, %arg6: memref<1x50xbf16, #tpu.memory_space<vmem>>, %arg7: memref<1x101xf32, #tpu.memory_space<vmem>>, %arg8: memref<8x1xf32, #tpu.memory_space<vmem>>) attributes {dimension_semantics = [#tpu.dimension_semantics<parallel>], iteration_bounds = array<i64: 1>, scalar_prefetch = 0 : i64, scratch_operands = 0 : i64, tpu.core_type = #tpu.core_type<tc>, window_params = [{transform_indices = @transform_0, window_bounds = array<i64: 8, 16>}, {transform_indices = @transform_1, window_bounds = array<i64: 8, 8>}, {pipeline_mode = #tpu.pipeline_mode<synchronous>, transform_indices = @transform_2, window_bounds = array<i64: 16, 50>}, {pipeline_mode = #tpu.pipeline_mode<synchronous>, transform_indices = @transform_3, window_bounds = array<i64: 8, 50>}, {pipeline_mode = #tpu.pipeline_mode<synchronous>, transform_indices = @transform_4, window_bounds = array<i64: 50, 50>}, {pipeline_mode = #tpu.pipeline_mode<synchronous>, transform_indices = @transform_5, window_bounds = array<i64: 1, 50>}, {pipeline_mode = #tpu.pipeline_mode<synchronous>, transform_indices = @transform_6, window_bounds = array<i64: 1, 101>}, {transform_indices = @transform_7, window_bounds = array<i64: 8, 1>}]} {
    %c0 = arith.constant 0 : index
    %c0_0 = arith.constant 0 : index
    %0 = vector.load %arg7[%c0, %c0_0] : memref<1x101xf32, #tpu.memory_space<vmem>>, vector<1x101xf32>
    %1 = vector.extract_strided_slice %0 {offsets = [0, 0], sizes = [1, 50], strides = [1, 1]} : vector<1x101xf32> to vector<1x50xf32>
    %2 = vector.extract_strided_slice %0 {offsets = [0, 50], sizes = [1, 50], strides = [1, 1]} : vector<1x101xf32> to vector<1x50xf32>
    %3 = vector.extract_strided_slice %0 {offsets = [0, 100], sizes = [1, 1], strides = [1, 1]} : vector<1x101xf32> to vector<1x1xf32>
    %c0_1 = arith.constant 0 : index
    %c0_2 = arith.constant 0 : index
    %4 = vector.load %arg1[%c0_1, %c0_2] : memref<8x16xbf16, #tpu.memory_space<vmem>>, vector<8x16xbf16>
    %c0_3 = arith.constant 0 : index
    %c0_4 = arith.constant 0 : index
    %5 = vector.load %arg3[%c0_3, %c0_4] : memref<16x50xbf16, #tpu.memory_space<vmem>>, vector<16x50xbf16>
    %cst = arith.constant dense<0.000000e+00> : vector<8x50xf32>
    %6 = tpu.matmul %4, %5, %cst {dimension_numbers = #tpu.dot_dimension_numbers<[1], [0], [0], [1], [0, 0, 1, 1], [], []>} : vector<8x16xbf16>, vector<16x50xbf16>, vector<8x50xf32> -> vector<8x50xf32>
    %c0_5 = arith.constant 0 : index
    %c0_6 = arith.constant 0 : index
    %7 = vector.load %arg2[%c0_5, %c0_6] : memref<8x8xbf16, #tpu.memory_space<vmem>>, vector<8x8xbf16>
    %c0_7 = arith.constant 0 : index
    %c0_8 = arith.constant 0 : index
    %8 = vector.load %arg4[%c0_7, %c0_8] : memref<8x50xbf16, #tpu.memory_space<vmem>>, vector<8x50xbf16>
    %cst_9 = arith.constant dense<0.000000e+00> : vector<8x50xf32>
    %9 = tpu.matmul %7, %8, %cst_9 {dimension_numbers = #tpu.dot_dimension_numbers<[1], [0], [0], [1], [0, 0, 1, 1], [], []>} : vector<8x8xbf16>, vector<8x50xbf16>, vector<8x50xf32> -> vector<8x50xf32>
    %10 = arith.addf %6, %9 : vector<8x50xf32>
    %11 = vector.broadcast %1 : vector<1x50xf32> to vector<8x50xf32>
    %12 = arith.addf %10, %11 : vector<8x50xf32>
    %13 = math.tanh %12 : vector<8x50xf32>
    %14 = arith.truncf %13 : vector<8x50xf32> to vector<8x50xbf16>
    %c0_10 = arith.constant 0 : index
    %c0_11 = arith.constant 0 : index
    %15 = vector.load %arg5[%c0_10, %c0_11] : memref<50x50xbf16, #tpu.memory_space<vmem>>, vector<50x50xbf16>
    %cst_12 = arith.constant dense<0.000000e+00> : vector<8x50xf32>
    %16 = tpu.matmul %14, %15, %cst_12 {dimension_numbers = #tpu.dot_dimension_numbers<[1], [0], [0], [1], [0, 0, 1, 1], [], []>} : vector<8x50xbf16>, vector<50x50xbf16>, vector<8x50xf32> -> vector<8x50xf32>
    %17 = vector.broadcast %2 : vector<1x50xf32> to vector<8x50xf32>
    %18 = arith.addf %16, %17 : vector<8x50xf32>
    %19 = math.tanh %18 : vector<8x50xf32>
    %c0_13 = arith.constant 0 : index
    %c0_14 = arith.constant 0 : index
    %20 = vector.load %arg6[%c0_13, %c0_14] : memref<1x50xbf16, #tpu.memory_space<vmem>>, vector<1x50xbf16>
    %21 = arith.extf %20 : vector<1x50xbf16> to vector<1x50xf32>
    %22 = vector.broadcast %21 : vector<1x50xf32> to vector<8x50xf32>
    %23 = arith.mulf %19, %22 : vector<8x50xf32>
    %cst_15 = arith.constant dense<0.000000e+00> : vector<8xf32>
    %24 = vector.multi_reduction <add>, %23, %cst_15 [1] : vector<8x50xf32> to vector<8xf32>
    %25 = vector.shape_cast %24 : vector<8xf32> to vector<8x1xf32>
    %26 = vector.broadcast %3 : vector<1x1xf32> to vector<8x1xf32>
    %27 = arith.addf %25, %26 : vector<8x1xf32>
    %c0_16 = arith.constant 0 : index
    %c0_17 = arith.constant 0 : index
    %28 = vector.load %arg8[%c0_16, %c0_17] : memref<8x1xf32, #tpu.memory_space<vmem>>, vector<8x1xf32>
    tpu.vector_store %arg8[%c0_16, %c0_17], %27 {strides = array<i32>} : memref<8x1xf32, #tpu.memory_space<vmem>>, vector<8x1xf32>,
    return
  }
  func.func @transform_0(%arg0: i32) -> (i32, i32) {
    %c0_i32 = arith.constant 0 : i32
    %c0_i32_0 = arith.constant 0 : i32
    return %arg0, %c0_i32 : i32, i32
  }
  func.func @transform_1(%arg0: i32) -> (i32, i32) {
    %c0_i32 = arith.constant 0 : i32
    %c0_i32_0 = arith.constant 0 : i32
    return %arg0, %c0_i32 : i32, i32
  }
  func.func @transform_2(%arg0: i32) -> (i32, i32) {
    %c0_i32 = arith.constant 0 : i32
    %c0_i32_0 = arith.constant 0 : i32
    %c0_i32_1 = arith.constant 0 : i32
    return %c0_i32, %c0_i32_0 : i32, i32
  }
  func.func @transform_3(%arg0: i32) -> (i32, i32) {
    %c0_i32 = arith.constant 0 : i32
    %c0_i32_0 = arith.constant 0 : i32
    %c0_i32_1 = arith.constant 0 : i32
    return %c0_i32, %c0_i32_0 : i32, i32
  }
  func.func @transform_4(%arg0: i32) -> (i32, i32) {
    %c0_i32 = arith.constant 0 : i32
    %c0_i32_0 = arith.constant 0 : i32
    %c0_i32_1 = arith.constant 0 : i32
    return %c0_i32, %c0_i32_0 : i32, i32
  }
  func.func @transform_5(%arg0: i32) -> (i32, i32) {
    %c0_i32 = arith.constant 0 : i32
    %c0_i32_0 = arith.constant 0 : i32
    %c0_i32_1 = arith.constant 0 : i32
    return %c0_i32, %c0_i32_0 : i32, i32
  }
  func.func @transform_6(%arg0: i32) -> (i32, i32) {
    %c0_i32 = arith.constant 0 : i32
    %c0_i32_0 = arith.constant 0 : i32
    %c0_i32_1 = arith.constant 0 : i32
    return %c0_i32, %c0_i32_0 : i32, i32
  }
  func.func @transform_7(%arg0: i32) -> (i32, i32) {
    %c0_i32 = arith.constant 0 : i32
    %c0_i32_0 = arith.constant 0 : i32
    return %arg0, %c0_i32 : i32, i32
  }
}

</mosaic_0001>

<llo_original>
// kernel: tpu_custom_call.1
$region0: #{tpu_custom_call.1}
  #allocation0 [shape = 'u32[]', space=smem, size = 0x4, offset = 0x4, fixed_abs, tag = 'smem constant byte address 0x4 - core index']
  #allocation1 [shape = 'u32[72,128]{1,0:T(1,128)}', space=vmem, size = 0x9000, scoped, tag = 'internal scratch']
  %s0 = inlined_call_operand.hbm [shape: bf16[8,16], index: 0, kind: input, shape index: {}]
  %s1 = inlined_call_operand.hbm [shape: bf16[8,8], index: 1, kind: input, shape index: {}]
  %s2 = inlined_call_operand.hbm [shape: bf16[16,50], index: 2, kind: input, shape index: {}]
  %s3 = inlined_call_operand.hbm [shape: bf16[8,50], index: 3, kind: input, shape index: {}]
  %s4 = inlined_call_operand.hbm [shape: bf16[50,50], index: 4, kind: input, shape index: {}]
  %s5 = inlined_call_operand.vmem [shape: bf16[1,50], index: 5, kind: input, shape index: {}]
  %s6 = inlined_call_operand.vmem [shape: f32[1,101], index: 6, kind: input, shape index: {}]
  %s7 = inlined_call_operand.vmem [shape: f32[8,1], index: 7, kind: output, shape index: {}]
  %s8 = sld [smem:[#allocation0]]
  $region58: #{tpu_custom_call.1} parent=0
    _
  %s10 = ssub.s32 1, %s8
  %s11 = scalar_select 0, %s10, %s8
  $region1: #{tpu_custom_call.1} parent=0
    #allocation2 [shape = 'u8[2048]{0}', space=vmem, size = 0x800, scoped, tag = 'input window, operand 0, single buffered']
    #allocation3 [shape = 's32[1]{0}', space=sflag, size = 0x4, scoped, tag = 'scoped memory for tpu_custom_call.1']
    #allocation4 [shape = 'u8[2048]{0}', space=vmem, size = 0x800, scoped, tag = 'input window, operand 1, single buffered']
    #allocation5 [shape = 's32[1]{0}', space=sflag, size = 0x4, scoped, tag = 'scoped memory for tpu_custom_call.1']
    #allocation6 [shape = 'u8[4096]{0}', space=vmem, size = 0x1000, scoped, tag = 'input window, operand 2, single buffered']
    #allocation7 [shape = 'u8[2048]{0}', space=vmem, size = 0x800, scoped, tag = 'input window, operand 3, single buffered']
    #allocation8 [shape = 's32[1]{0}', space=sflag, size = 0x4, scoped, tag = 'scoped memory for tpu_custom_call.1']
    #allocation9 [shape = 'u8[14336]{0}', space=vmem, size = 0x3800, scoped, tag = 'input window, operand 4, single buffered']
    %12 = vsyncpa [#allocation3], 0
    %13 = vsyncpa [#allocation5], 0
    %14 = vsyncpa [#allocation8], 0
    // Predicated region
    $region2: #{tpu_custom_call.1} parent=1 // pred_check
      _
    $region3: #{tpu_custom_call.1} parent=1 // pred_check_branch
      %16 = sbr.rel (0) target = $region5
    $region4: #{tpu_custom_call.1} parent=1 // pred_region
      %18 = vsyncadd [#allocation3], 0
      %s20 = sshll.u32 %s0, 4
      %s21 = int_to_ptr.hbm [resolvable:$true] %s20
      %s22 = sshll.u32 [#allocation2], 4
      %s23 = int_to_ptr.vmem [resolvable:$true] %s22
      %25 = dma.hbm_to_vmem [thread:$0]  %s21, 64, %s23, [#allocation3]
    $region5: #{tpu_custom_call.1} parent=1 // pred_fallthru
      _
    // Predicated region
    $region6: #{tpu_custom_call.1} parent=1 // pred_check
      _
    $region7: #{tpu_custom_call.1} parent=1 // pred_check_branch
      %27 = sbr.rel (0) target = $region9
    $region8: #{tpu_custom_call.1} parent=1 // pred_region
      %29 = vsyncadd [#allocation5], 0
      %s31 = sshll.u32 %s1, 4
      %s32 = int_to_ptr.hbm [resolvable:$true] %s31
      %s33 = sshll.u32 [#allocation4], 4
      %s34 = int_to_ptr.vmem [resolvable:$true] %s33
      %36 = dma.hbm_to_vmem [thread:$0]  %s32, 64, %s34, [#allocation5]
    $region9: #{tpu_custom_call.1} parent=1 // pred_fallthru
      _
    // Predicated region
    $region10: #{tpu_custom_call.1} parent=1 // pred_check
      _
    $region11: #{tpu_custom_call.1} parent=1 // pred_check_branch
      %38 = sbr.rel (0) target = $region13
    $region12: #{tpu_custom_call.1} parent=1 // pred_region
      %40 = vsyncadd [#allocation5], 0
      %s41 = sshll.u32 %s2, 4
      %s42 = int_to_ptr.hbm [resolvable:$true] %s41
      %s43 = sshll.u32 [#allocation6], 4
      %s44 = int_to_ptr.vmem [resolvable:$true] %s43
      %49 = dma.hbm_to_vmem [thread:$0]  %s42, 128, %s44, [#allocation5], 64, 64, 4
    $region13: #{tpu_custom_call.1} parent=1 // pred_fallthru
      _
    // Predicated region
    $region14: #{tpu_custom_call.1} parent=1 // pred_check
      _
    $region15: #{tpu_custom_call.1} parent=1 // pred_check_branch
      %51 = sbr.rel (0) target = $region17
    $region16: #{tpu_custom_call.1} parent=1 // pred_region
      %53 = vsyncadd [#allocation8], 0
      %s55 = sshll.u32 %s3, 4
      %s56 = int_to_ptr.hbm [resolvable:$true] %s55
      %s57 = sshll.u32 [#allocation7], 4
      %s58 = int_to_ptr.vmem [resolvable:$true] %s57
      %60 = dma.hbm_to_vmem [thread:$0]  %s56, 64, %s58, [#allocation8]
    $region17: #{tpu_custom_call.1} parent=1 // pred_fallthru
      _
    // Predicated region
    $region18: #{tpu_custom_call.1} parent=1 // pred_check
      _
    $region19: #{tpu_custom_call.1} parent=1 // pred_check_branch
      %62 = sbr.rel (0) target = $region21
    $region20: #{tpu_custom_call.1} parent=1 // pred_region
      %64 = vsyncadd [#allocation8], 0
      %s65 = sshll.u32 %s4, 4
      %s66 = int_to_ptr.hbm [resolvable:$true] %s65
      %s67 = sshll.u32 [#allocation9], 4
      %s68 = int_to_ptr.vmem [resolvable:$true] %s67
      %73 = dma.hbm_to_vmem [thread:$0]  %s66, 448, %s68, [#allocation8], 64, 64, 4
    $region21: #{tpu_custom_call.1} parent=1 // pred_fallthru
      _
    // Predicated region
    $region22: #{tpu_custom_call.1} parent=1 // pred_check
      _
    $region23: #{tpu_custom_call.1} parent=1 // pred_check_branch
      %75 = sbr.rel (0) target = $region25
    $region24: #{tpu_custom_call.1} parent=1 // pred_region
      _
    $region25: #{tpu_custom_call.1} parent=1 // pred_fallthru
      _
    // Predicated region
    $region26: #{tpu_custom_call.1} parent=1 // pred_check
      _
    $region27: #{tpu_custom_call.1} parent=1 // pred_check_branch
      %77 = sbr.rel (0) target = $region29
    $region28: #{tpu_custom_call.1} parent=1 // pred_region
      _
    $region29: #{tpu_custom_call.1} parent=1 // pred_fallthru
      _
    // Predicated region
    $region30: #{tpu_custom_call.1} parent=1 // pred_check
      _
    $region31: #{tpu_custom_call.1} parent=1 // pred_check_branch
      %79 = sbr.rel (0) target = $region33
    $region32: #{tpu_custom_call.1} parent=1 // pred_region
      %81 = dma.done [#allocation3], 64
    $region33: #{tpu_custom_call.1} parent=1 // pred_fallthru
      _
    // Predicated region
    $region34: #{tpu_custom_call.1} parent=1 // pred_check
      _
    $region35: #{tpu_custom_call.1} parent=1 // pred_check_branch
      %83 = sbr.rel (0) target = $region37
    $region36: #{tpu_custom_call.1} parent=1 // pred_region
      %85 = dma.done [#allocation5], 64
    $region37: #{tpu_custom_call.1} parent=1 // pred_fallthru
      _
    // Predicated region
    $region38: #{tpu_custom_call.1} parent=1 // pred_check
      _
    $region39: #{tpu_custom_call.1} parent=1 // pred_check_branch
      %87 = sbr.rel (0) target = $region41
    $region40: #{tpu_custom_call.1} parent=1 // pred_region
      %89 = dma.done [#allocation5], 128
    $region41: #{tpu_custom_call.1} parent=1 // pred_fallthru
      _
    // Predicated region
    $region42: #{tpu_custom_call.1} parent=1 // pred_check
      _
    $region43: #{tpu_custom_call.1} parent=1 // pred_check_branch
      %91 = sbr.rel (0) target = $region45
    $region44: #{tpu_custom_call.1} parent=1 // pred_region
      %93 = dma.done [#allocation8], 64
    $region45: #{tpu_custom_call.1} parent=1 // pred_fallthru
      _
    // Predicated region
    $region46: #{tpu_custom_call.1} parent=1 // pred_check
      _
    $region47: #{tpu_custom_call.1} parent=1 // pred_check_branch
      %95 = sbr.rel (0) target = $region49
    $region48: #{tpu_custom_call.1} parent=1 // pred_region
      %97 = dma.done [#allocation8], 448
    $region49: #{tpu_custom_call.1} parent=1 // pred_fallthru
      _
    %v99 = vld [vmem:[%s6] sm:$0x1]
    %v100 = vld [vmem:[#allocation2] sm:$0xf]
    %v101 = vld [vmem:[#allocation6] sm:$0xf]
    %v102 = vld [vmem:[#allocation6 + $0x4] sm:$0xf]
    %v103 = vld [vmem:[#allocation4] sm:$0xf]
    %v104 = vld [vmem:[#allocation7] sm:$0xf]
    %vm105 = vcmask 64512
    %v107 = vsel %vm105, %v103, 0
    %vm109 = vcmask 1043456
    %v111 = vsel %vm109, %v104, 0
    %113 = vmatpush.bf16.msra.mxu0 0
    %114 = vmatpush.bf16.msra.mxu0 0
    %115 = vmatpush.bf16.msra.mxu0 0
    %116 = vmatpush.bf16.msra.mxu0 0
    %117 = vmatpush.bf16.msra.mxu0 0
    %118 = vmatpush.bf16.msra.mxu0 0
    %119 = vmatpush.bf16.msra.mxu0 0
    %120 = vmatpush.bf16.msra.mxu0 %v111
    %121 = vmatmul.bf16.gmra.mxu0 %v107
    %v122 = vpop.f32.mrf.mxu0
    %v123 = vadd.f32 0.0, %v122
    %v124 = vpop.f32.mrf.mxu0
    %125 = vdwg.mxu0
    %v128 = vunpack.c.l.b16 %v101
    %v129 = vunpack.c.l.b16 %v102
    %v130 = vpack.c.b16 %v129, %v128
    %vm132 = vcmask 130048
    %v134 = vsel %vm132, %v100, 0
    %136 = vmatpush.bf16.msra.mxu0 0
    %137 = vmatpush.bf16.msra.mxu0 0
    %138 = vmatpush.bf16.msra.mxu0 0
    %139 = vmatpush.bf16.msra.mxu0 0
    %140 = vmatpush.bf16.msra.mxu0 0
    %141 = vmatpush.bf16.msra.mxu0 0
    %142 = vmatpush.bf16.msra.mxu0 0
    %143 = vmatpush.bf16.msra.mxu0 %v130
    %144 = vmatmul.bf16.gmra.mxu0 %v134
    %v145 = vpop.f32.mrf.mxu0
    %v146 = vadd.f32 %v123, %v145
    %v147 = vpop.f32.mrf.mxu0
    %148 = vdwg.mxu0
    %v150 = vperm.slane %v99, 0
    %v152 = vadd.f32 %v146, %v150
    %v153 = vtanh.pop %v152
    %v154 = vpack.c.bf16 %v153, %v153
    %v155 = vld [vmem:[#allocation9] sm:$0xf]
    %v156 = vld [vmem:[#allocation9 + $0x4] sm:$0xf]
    %v157 = vld [vmem:[#allocation9 + $0x8] sm:$0xf]
    %v158 = vld [vmem:[#allocation9 + $0xc] sm:$0xf]
    %v159 = vld [vmem:[#allocation9 + $0x10] sm:$0xf]
    %v160 = vld [vmem:[#allocation9 + $0x14] sm:$0xf]
    %v161 = vld [vmem:[#allocation9 + $0x18] sm:$0x1]
    %v169 = vunpack.c.l.b16 %v155
    %v170 = vunpack.c.l.b16 %v156
    %v171 = vunpack.c.l.b16 %v157
    %v172 = vunpack.c.l.b16 %v158
    %v173 = vunpack.c.l.b16 %v159
    %v174 = vunpack.c.l.b16 %v160
    %v175 = vunpack.c.l.b16 %v161
    %v176 = vpack.c.b16 %v170, %v169
    %v177 = vpack.c.b16 %v172, %v171
    %v178 = vpack.c.b16 %v174, %v173
    %v179 = vpack.c.b16 %v175, %v175
    %183 = vrot.lane.b32.xlu0 %v150, 78
    %v184 = vpop.permute.xlu0 %183
    %vm186 = vcmask 408576
    %v188 = vsel %vm186, %v154, 0
    %vm190 = vcmask 1040384
    %v192 = vsel %vm190, %v179, 0
    %194 = vmatpush.bf16.msra.mxu0 0
    %195 = vmatpush.bf16.msra.mxu0 0
    %196 = vmatpush.bf16.msra.mxu0 0
    %197 = vmatpush.bf16.msra.mxu0 0
    %198 = vmatpush.bf16.msra.mxu0 %v192
    %199 = vmatpush.bf16.msra.mxu0 %v178
    %200 = vmatpush.bf16.msra.mxu0 %v177
    %201 = vmatpush.bf16.msra.mxu0 %v176
    %202 = vmatmul.bf16.gmra.mxu0 %v188
    %v203 = vpop.f32.mrf.mxu0
    %v204 = vadd.f32 %v184, %v203
    %v205 = vpop.f32.mrf.mxu0
    %206 = vdwg.mxu0
    %v207 = vtanh.pop %v204
    %v208 = vld [vmem:[%s5] sm:$0x1]
    %v209 = vunpack.c.l.bf16 %v208
    %v210 = vperm.slane %v209, 0
    %v211 = vmul.f32 %v207, %v210
    %v212 = vsel %vm186, %v211, 0.0
    %213 = vadd.xlane.f32.xlu0 %v212
    %v214 = vpop.xlane.xlu0 %213
    %v215 = vadd.f32 %v214, %v150
    %217 = vrot.lane.b32.xlu0 %v215, 28
    %v218 = vpop.permute.xlu0 %217
    %vm220 = vcmask 7168
    %221 = vst.msk [vmem:[%s7] sm:$0xff] %vm220, %v218
    // Predicated region
    $region50: #{tpu_custom_call.1} parent=1 // pred_check
      _
    $region51: #{tpu_custom_call.1} parent=1 // pred_check_branch
      %223 = sbr.rel (0) target = $region53
    $region52: #{tpu_custom_call.1} parent=1 // pred_region
      _
    $region53: #{tpu_custom_call.1} parent=1 // pred_fallthru
      _
    // Predicated region
    $region54: #{tpu_custom_call.1} parent=1 // pred_check
      _
    $region55: #{tpu_custom_call.1} parent=1 // pred_check_branch
      %225 = sbr.rel (0) target = $region57
    $region56: #{tpu_custom_call.1} parent=1 // pred_region
      _
    $region57: #{tpu_custom_call.1} parent=1 // pred_fallthru
      _
    %226 = vsyncpa [#allocation3], 1
    %227 = vsyncpa [#allocation5], 1
    %228 = vsyncpa [#allocation8], 1

</llo_original>
